<compile_context>
chip_gen: v7x
topology: tpu7x:2x2x1
jax: 0.10.0
libtpu: 0.0.40
codegen_flags: <defaults>
</compile_context>

<pallas_src>
import jax
import jax.numpy as jnp
from jax.experimental import pallas as pl
from jax.experimental.pallas import tpu as pltpu


def _add_relu_kernel(a_ref, b_ref, o_ref):
    # Fused elementwise add + relu over the whole VMEM tile (VPU hot path).
    o_ref[...] = jnp.maximum(a_ref[...] + b_ref[...], 0).astype(o_ref.dtype)


_MAX_LANES = 4096                # widest lane-dense view considered
_TARGET_BLOCK_BYTES = 4 << 20    # <= 4 MiB per operand per block
_MIN_GRID_STEPS = 4              # >= 2 steps per TensorCore on a 2-core chip


def _pick_cols(n):
    """Largest multiple of 128 (<= _MAX_LANES) that divides n; 0 if none."""
    if n % 128 != 0:
        return 0
    for m in range(_MAX_LANES // 128, 0, -1):
        c = 128 * m
        if n % c == 0:
            return c
    return 128  # unreachable: n % 128 == 0 guarantees the loop returns


def _round_up(x, mult):
    return ((x + mult - 1) // mult) * mult


def _dimension_semantics(num_blocks):
    """Explicit cross-TensorCore sharding on v7x-class (2-core) chips."""
    kind = ""
    try:
        kind = jax.devices()[0].device_kind.lower()
    except Exception:
        pass
    two_core = ("v7" in kind) or ("7x" in kind)
    if two_core and num_blocks >= 2 and num_blocks % 2 == 0:
        return (pltpu.CORE_PARALLEL,)
    return (pltpu.PARALLEL,)


def add_relu(x200, x192):
    """out = relu(x200 + x192), elementwise; matches the PyTorch module."""
    assert x200.shape == x192.shape and x200.dtype == x192.dtype
    orig_shape = x200.shape
    n = x200.size
    itemsize = jnp.dtype(x200.dtype).itemsize

    cols = _pick_cols(n)
    if cols == 0:
        # Rare fallback (element count not a multiple of 128; never the case
        # for this module's NCHW activations).  A single fused XLA elementwise
        # op already moves the minimal 3*N*itemsize bytes -- strictly better
        # than padding/slicing whole arrays around a Pallas call.
        return jnp.maximum(x200 + x192, 0)

    rows = n // cols
    a2 = x200.reshape(rows, cols)   # free metadata reshape (row-major)
    b2 = x192.reshape(rows, cols)

    # Block rows: as large as possible up to ~4 MiB/operand, but small enough
    # that the grid keeps >= _MIN_GRID_STEPS near-equal steps (pipelining +
    # balanced 2-TensorCore split).  Rounded to the sublane packing granule.
    sub = max(8, 32 // itemsize)                 # 8 rows f32, 16 bf16, 32 int8
    row_bytes = cols * itemsize
    cap_rows = max(sub, (_TARGET_BLOCK_BYTES // row_bytes) // sub * sub)
    split_rows = _round_up(pl.cdiv(rows, _MIN_GRID_STEPS), sub)
    block_rows = max(sub, min(cap_rows, split_rows))
    if block_rows >= rows:
        block_rows = rows                        # single full-array block
        num_blocks = 1
    else:
        num_blocks = pl.cdiv(rows, block_rows)   # edge block masked by Pallas

    spec = pl.BlockSpec((block_rows, cols), lambda i: (i, 0))

    def _run(dim_sems):
        return pl.pallas_call(
            _add_relu_kernel,
            out_shape=jax.ShapeDtypeStruct((rows, cols), x200.dtype),
            grid_spec=pltpu.PrefetchScalarGridSpec(
                num_scalar_prefetch=0,
                grid=(num_blocks,),
                in_specs=[spec, spec],
                out_specs=spec,
            ),
            compiler_params=pltpu.CompilerParams(
                dimension_semantics=dim_sems,
                # 3 operands x 2 pipeline buffers x <=4 MiB <= 24 MiB used.
                vmem_limit_bytes=32 * 1024 * 1024,
            ),
        )(a2, b2)

    dim_sems = _dimension_semantics(num_blocks)
    try:
        out2 = _run(dim_sems)
    except Exception:
        if dim_sems == (pltpu.PARALLEL,):
            raise
        out2 = _run((pltpu.PARALLEL,))           # conservative fallback

    return out2.reshape(orig_shape)


if __name__ == "__main__":
    key = jax.random.PRNGKey(0)
    k1, k2, k3, k4 = jax.random.split(key, 4)

    # Small NCHW shape consistent with the module (reduced channel count).
    shape_small = (1, 64, 28, 28)
    a_s = jax.random.normal(k1, shape_small, dtype=jnp.float32)
    b_s = jax.random.normal(k2, shape_small, dtype=jnp.float32)
    out_s = add_relu(a_s, b_s)
    jax.block_until_ready(out_s)
    ref_s = jnp.maximum(a_s + b_s, 0.0)
    assert out_s.shape == shape_small and out_s.dtype == a_s.dtype
    assert jnp.allclose(out_s, ref_s, atol=1e-6), "mismatch vs reference (small)"

    # Full spec shape (1, 1024, 28, 28): exercises the multi-block tiled path
    # (cols=4096, block_rows=56, grid=4 with balanced 56/56/56/28-row blocks).
    shape_full = (1, 1024, 28, 28)
    a_f = jax.random.normal(k3, shape_full, dtype=jnp.float32)
    b_f = jax.random.normal(k4, shape_full, dtype=jnp.float32)
    out_f = add_relu(a_f, b_f)
    jax.block_until_ready(out_f)
    ref_f = jnp.maximum(a_f + b_f, 0.0)
    assert out_f.shape == shape_full
    assert jnp.allclose(out_f, ref_f, atol=1e-6), "mismatch vs reference (full)"

    print("KERNEL_OK")
</pallas_src>

<mosaic_0001>
module attributes {stable_mosaic.version = 11 : i64} {
  func.func @_add_relu_kernel(%arg0: i32, %arg1: memref<8x3584xf32, #tpu.memory_space<vmem>>, %arg2: memref<8x3584xf32, #tpu.memory_space<vmem>>, %arg3: memref<8x3584xf32, #tpu.memory_space<vmem>>) attributes {dimension_semantics = [#tpu.dimension_semantics<parallel>], iteration_bounds = array<i64: 2>, scalar_prefetch = 0 : i64, scratch_operands = 0 : i64, tpu.core_type = #tpu.core_type<tc>, window_params = [{transform_indices = @transform_0, window_bounds = array<i64: 8, 3584>}, {transform_indices = @transform_1, window_bounds = array<i64: 8, 3584>}, {transform_indices = @transform_2, window_bounds = array<i64: 8, 3584>}]} {
    %c0 = arith.constant 0 : index
    %c0_0 = arith.constant 0 : index
    %0 = vector.load %arg1[%c0, %c0_0] : memref<8x3584xf32, #tpu.memory_space<vmem>>, vector<8x3584xf32>
    %c0_1 = arith.constant 0 : index
    %c0_2 = arith.constant 0 : index
    %1 = vector.load %arg2[%c0_1, %c0_2] : memref<8x3584xf32, #tpu.memory_space<vmem>>, vector<8x3584xf32>
    %2 = arith.addf %0, %1 : vector<8x3584xf32>
    %cst = arith.constant 0.000000e+00 : f32
    %3 = vector.broadcast %cst : f32 to vector<8x3584xf32>
    %4 = arith.maximumf %2, %3 : vector<8x3584xf32>
    %c0_3 = arith.constant 0 : index
    %c0_4 = arith.constant 0 : index
    %5 = vector.load %arg3[%c0_3, %c0_4] : memref<8x3584xf32, #tpu.memory_space<vmem>>, vector<8x3584xf32>
    tpu.vector_store %arg3[%c0_3, %c0_4], %4 {strides = array<i32>} : memref<8x3584xf32, #tpu.memory_space<vmem>>, vector<8x3584xf32>,
    return
  }
  func.func @transform_0(%arg0: i32) -> (i32, i32) {
    %c0_i32 = arith.constant 0 : i32
    %c0_i32_0 = arith.constant 0 : i32
    return %arg0, %c0_i32 : i32, i32
  }
  func.func @transform_1(%arg0: i32) -> (i32, i32) {
    %c0_i32 = arith.constant 0 : i32
    %c0_i32_0 = arith.constant 0 : i32
    return %arg0, %c0_i32 : i32, i32
  }
  func.func @transform_2(%arg0: i32) -> (i32, i32) {
    %c0_i32 = arith.constant 0 : i32
    %c0_i32_0 = arith.constant 0 : i32
    return %arg0, %c0_i32 : i32, i32
  }
}

</mosaic_0001>

<llo_original>
// kernel: tpu_custom_call.1
$region0: #{tpu_custom_call.1}
  #allocation0 [shape = 'u32[]', space=smem, size = 0x4, offset = 0x4, fixed_abs, tag = 'smem constant byte address 0x4 - core index']
  #allocation1 [shape = 'u32[144,128]{1,0:T(1,128)}', space=vmem, size = 0x12000, scoped, tag = 'internal scratch']
  %s0 = inlined_call_operand.hbm [shape: f32[14,3584], index: 0, kind: input, shape index: {}]
  %s1 = inlined_call_operand.hbm [shape: f32[14,3584], index: 1, kind: input, shape index: {}]
  %s2 = inlined_call_operand.hbm [shape: f32[14,3584], index: 2, kind: output, shape index: {}]
  %s3 = sld [smem:[#allocation0]]
  $region49: #{tpu_custom_call.1} parent=0
    _
  %s5 = ssub.s32 1, %s3
  %s6 = scalar_select 0, %s5, %s3
  $region1: #{tpu_custom_call.1} parent=0
    #allocation2 [shape = 'u8[229376]{0}', space=vmem, size = 0x38000, scoped, tag = 'input window, operand 0']
    #allocation3 [shape = 's32[2]{0}', space=sflag, size = 0x8, scoped, tag = 'scoped memory for tpu_custom_call.1']
    #allocation4 [shape = 's32[2]{0}', space=sflag, size = 0x8, scoped, tag = 'scoped memory for tpu_custom_call.1']
    #allocation5 [shape = 'u8[229376]{0}', space=vmem, size = 0x38000, scoped, tag = 'input window, operand 1']
    #allocation6 [shape = 's32[2]{0}', space=sflag, size = 0x8, scoped, tag = 'scoped memory for tpu_custom_call.1']
    #allocation7 [shape = 'u8[229376]{0}', space=vmem, size = 0x38000, scoped, tag = 'output window, operand 0']
    %7 = vsyncpa [#allocation3], 0
    %s8 = scalar_lea.sflag [#allocation3], 1
    %9 = vsyncpa %s8, 0
    %10 = vsyncpa [#allocation6], 0
    %s11 = scalar_lea.sflag [#allocation6], 1
    %12 = vsyncpa %s11, 0
    %13 = vsyncpa [#allocation4], 0
    %s14 = scalar_lea.sflag [#allocation4], 1
    %15 = vsyncpa %s14, 0
    loop: start=0, step=1, limit=4
    $region2: #{tpu_custom_call.1} parent=1 // loop_pre_header
      _
    $region3: #{tpu_custom_call.1} parent=1 // loop_header
      %s17 = sphi 0, %s21
      %p18 = scmp.ge.s32.totalorder %s17, 4
      %s27 = sphi 0, %s29
      %s30 = sphi 0, %s27
      %s31 = sphi 0, %s30
      %s47 = sphi 0, %s31
      %s53 = sphi 0, %s55
      %s56 = sphi 0, %s53
      %s57 = sphi 0, %s56
      %s73 = sphi 0, %s57
      %s79 = sphi 0, %s81
      %s82 = sphi 0, %s79
      %s83 = sphi 0, %s82
      %s99 = sphi 0, %s83
    $region4: #{tpu_custom_call.1} parent=1 // loop_header_branch
      %20 = sbr.rel (%p18) target = $region8
    $region5: #{tpu_custom_call.1} parent=1 // loop_body
      %s22 = ssub.s32 %s17, 1
      %s23 = ssub.s32 %s17, 2
      %s24 = sadd.s32 %s17, 1
      %s25 = ssub.s32 %s17, %s24
      %p26 = scmp.eq.s32.totalorder %s25, 0
      %s28 = sadd.s32 %s27, 1
      %s29 = scalar_select %p26, %s27, %s28
      %p32 = pneg %p26
      %p33 = scmp.eq.s32.totalorder %s17, 1
      %p34 = por %p32, %p33
      %p35 = scmp.ne.s32.totalorder %s27, %s30
      %p36 = scmp.eq.s32.totalorder %s17, 0
      %p37 = por %p35, %p36
      %p38 = scmp.ne.s32.totalorder %s27, %s30
      %p39 = scmp.eq.s32.totalorder %s22, 1
      %p40 = por %p38, %p39
      %p41 = scmp.ne.s32.totalorder %s30, %s31
      %p42 = scmp.eq.s32.totalorder %s22, 0
      %p43 = por %p41, %p42
      %p44 = scmp.ne.s32.totalorder %s30, %s31
      %p45 = scmp.eq.s32.totalorder %s23, 1
      %p46 = por %p44, %p45
      %p48 = scmp.ne.s32.totalorder %s31, %s47
      %p49 = scmp.eq.s32.totalorder %s23, 0
      %p50 = por %p48, %p49
      %s51 = ssub.s32 %s17, %s24
      %p52 = scmp.eq.s32.totalorder %s51, 0
      %s54 = sadd.s32 %s53, 1
      %s55 = scalar_select %p52, %s53, %s54
      %p58 = pneg %p52
      %p59 = scmp.eq.s32.totalorder %s17, 1
      %p60 = por %p58, %p59
      %p61 = scmp.ne.s32.totalorder %s53, %s56
      %p62 = scmp.eq.s32.totalorder %s17, 0
      %p63 = por %p61, %p62
      %p64 = scmp.ne.s32.totalorder %s53, %s56
      %p65 = scmp.eq.s32.totalorder %s22, 1
      %p66 = por %p64, %p65
      %p67 = scmp.ne.s32.totalorder %s56, %s57
      %p68 = scmp.eq.s32.totalorder %s22, 0
      %p69 = por %p67, %p68
      %p70 = scmp.ne.s32.totalorder %s56, %s57
      %p71 = scmp.eq.s32.totalorder %s23, 1
      %p72 = por %p70, %p71
      %p74 = scmp.ne.s32.totalorder %s57, %s73
      %p75 = scmp.eq.s32.totalorder %s23, 0
      %p76 = por %p74, %p75
      %s77 = ssub.s32 %s17, %s24
      %p78 = scmp.eq.s32.totalorder %s77, 0
      %s80 = sadd.s32 %s79, 1
      %s81 = scalar_select %p78, %s79, %s80
      %p84 = pneg %p78
      %p85 = scmp.eq.s32.totalorder %s17, 1
      %p86 = por %p84, %p85
      %p87 = scmp.ne.s32.totalorder %s79, %s82
      %p88 = scmp.eq.s32.totalorder %s17, 0
      %p89 = por %p87, %p88
      %p90 = scmp.ne.s32.totalorder %s79, %s82
      %p91 = scmp.eq.s32.totalorder %s22, 1
      %p92 = por %p90, %p91
      %p93 = scmp.ne.s32.totalorder %s82, %s83
      %p94 = scmp.eq.s32.totalorder %s22, 0
      %p95 = por %p93, %p94
      %p96 = scmp.ne.s32.totalorder %s82, %s83
      %p97 = scmp.eq.s32.totalorder %s23, 1
      %p98 = por %p96, %p97
      %p100 = scmp.ne.s32.totalorder %s83, %s99
      %p101 = scmp.eq.s32.totalorder %s23, 0
      %p102 = por %p100, %p101
      %p103 = scmp.le.s32.totalorder 1, %s17
      %p104 = scmp.lt.s32.totalorder %s17, 3
      %p105 = pnand %p103, %p104
      %p106 = pneg %p105
      // Predicated region
      $region9: #{tpu_custom_call.1} parent=5 // pred_check
        _
      $region10: #{tpu_custom_call.1} parent=5 // pred_check_branch
        %108 = sbr.rel (%p105) target = $region12
      $region11: #{tpu_custom_call.1} parent=5 // pred_region
        %s109 = ssub.s32 %s17, 1
      $region12: #{tpu_custom_call.1} parent=5 // pred_fallthru
        _
      %p110 = scmp.lt.s32.totalorder %s17, 2
      // Predicated region
      $region13: #{tpu_custom_call.1} parent=5 // pred_check
        %p111 = pneg %p110
      $region14: #{tpu_custom_call.1} parent=5 // pred_check_branch
        %113 = sbr.rel (%p111) target = $region16
      $region15: #{tpu_custom_call.1} parent=5 // pred_region
        // Predicated region
        $region17: #{tpu_custom_call.1} parent=15 // pred_check
          %p114 = pneg %p37
        $region18: #{tpu_custom_call.1} parent=15 // pred_check_branch
          %116 = sbr.rel (%p114) target = $region20
        $region19: #{tpu_custom_call.1} parent=15 // pred_region
          %s117 = sand.u32 %s27, 1
          %s118 = scalar_lea.sflag [#allocation3], %s117
          %s119 = sand.u32 %s27, 1
          %s120 = smul.addr %s119, 224
          %s121 = scalar_lea.vmem [#allocation2], %s120
          %s123 = ssub.s32 3584, 3584
          %124 = vsyncadd %s118, %s123
          %s125 = smul.addr %s17, 28
          %s126 = smul.addr %s125, 128
          %s127 = scalar_lea.hbm %s0, %s126
          %s129 = sshll.u32 %s121, 4
          %s130 = int_to_ptr.vmem [resolvable:$true] %s129
          %132 = dma.hbm_to_vmem [thread:$0]  %s127, 3584, %s130, %s118
        $region20: #{tpu_custom_call.1} parent=15 // pred_fallthru
          _
        // Predicated region
        $region21: #{tpu_custom_call.1} parent=15 // pred_check
          %p133 = pneg %p63
        $region22: #{tpu_custom_call.1} parent=15 // pred_check_branch
          %135 = sbr.rel (%p133) target = $region24
        $region23: #{tpu_custom_call.1} parent=15 // pred_region
          %s136 = sand.u32 %s53, 1
          %s137 = scalar_lea.sflag [#allocation6], %s136
          %s138 = sand.u32 %s53, 1
          %s139 = smul.addr %s138, 224
          %s140 = scalar_lea.vmem [#allocation5], %s139
          %s142 = ssub.s32 3584, 3584
          %143 = vsyncadd %s137, %s142
          %s144 = smul.addr %s17, 28
          %s145 = smul.addr %s144, 128
          %s146 = scalar_lea.hbm %s1, %s145
          %s148 = sshll.u32 %s140, 4
          %s149 = int_to_ptr.vmem [resolvable:$true] %s148
          %151 = dma.hbm_to_vmem [thread:$0]  %s146, 3584, %s149, %s137
        $region24: #{tpu_custom_call.1} parent=15 // pred_fallthru
          _
      $region16: #{tpu_custom_call.1} parent=5 // pred_fallthru
        _
      %p152 = scmp.le.s32.totalorder 1, %s17
      %p153 = scmp.lt.s32.totalorder %s17, 3
      %p154 = pnand %p152, %p153
      %p155 = pneg %p154
      // Predicated region
      $region25: #{tpu_custom_call.1} parent=5 // pred_check
        _
      $region26: #{tpu_custom_call.1} parent=5 // pred_check_branch
        %157 = sbr.rel (%p154) target = $region28
      $region27: #{tpu_custom_call.1} parent=5 // pred_region
        %s158 = ssub.s32 %s17, 1
        %s159 = sand.u32 %s30, 1
        %s160 = scalar_lea.sflag [#allocation3], %s159
        %s161 = sand.u32 %s30, 1
        %s162 = smul.addr %s161, 224
        %s163 = scalar_lea.vmem [#allocation2], %s162
        // Predicated region
        $region29: #{tpu_custom_call.1} parent=27 // pred_check
          %p164 = pneg %p43
        $region30: #{tpu_custom_call.1} parent=27 // pred_check_branch
          %166 = sbr.rel (%p164) target = $region32
        $region31: #{tpu_custom_call.1} parent=27 // pred_region
          %167 = dma.done %s160, 3584
        $region32: #{tpu_custom_call.1} parent=27 // pred_fallthru
          _
        %s168 = sand.u32 %s56, 1
        %s169 = scalar_lea.sflag [#allocation6], %s168
        %s170 = sand.u32 %s56, 1
        %s171 = smul.addr %s170, 224
        %s172 = scalar_lea.vmem [#allocation5], %s171
        // Predicated region
        $region33: #{tpu_custom_call.1} parent=27 // pred_check
          %p173 = pneg %p69
        $region34: #{tpu_custom_call.1} parent=27 // pred_check_branch
          %175 = sbr.rel (%p173) target = $region36
        $region35: #{tpu_custom_call.1} parent=27 // pred_region
          %176 = dma.done %s169, 3584
        $region36: #{tpu_custom_call.1} parent=27 // pred_fallthru
          _
        %s177 = sand.u32 %s30, 1
        %s178 = scalar_lea.sflag [#allocation3], %s177
        %s179 = sand.u32 %s30, 1
        %s180 = smul.addr %s179, 224
        %s181 = scalar_lea.vmem [#allocation2], %s180
        %p182 = pneg %p43
        %p183 = pneg %p40
        %s184 = sand.u32 %s56, 1
        %s185 = scalar_lea.sflag [#allocation6], %s184
        %s186 = sand.u32 %s56, 1
        %s187 = smul.addr %s186, 224
        %s188 = scalar_lea.vmem [#allocation5], %s187
        %p189 = pneg %p69
        %p190 = pneg %p66
        %p191 = pneg %p95
        %p192 = pneg %p92
        %s193 = sand.u32 %s82, 1
        %s194 = scalar_lea.sflag [#allocation4], %s193
        %s195 = sand.u32 %s82, 1
        %s196 = smul.addr %s195, 224
        %s197 = scalar_lea.vmem [#allocation7], %s196
        %v198 = vld [vmem:[%s163] sm:$0xff]
        %v199 = vld [vmem:[%s163 + $0x8] sm:$0xff]
        %v200 = vld [vmem:[%s163 + $0x10] sm:$0xff]
        %v201 = vld [vmem:[%s163 + $0x18] sm:$0xff]
        %v202 = vld [vmem:[%s163 + $0x20] sm:$0xff]
        %v203 = vld [vmem:[%s163 + $0x28] sm:$0xff]
        %v204 = vld [vmem:[%s163 + $0x30] sm:$0xff]
        %v205 = vld [vmem:[%s163 + $0x38] sm:$0xff]
        %v206 = vld [vmem:[%s163 + $0x40] sm:$0xff]
        %v207 = vld [vmem:[%s163 + $0x48] sm:$0xff]
        %v208 = vld [vmem:[%s163 + $0x50] sm:$0xff]
        %v209 = vld [vmem:[%s163 + $0x58] sm:$0xff]
        %v210 = vld [vmem:[%s163 + $0x60] sm:$0xff]
        %v211 = vld [vmem:[%s163 + $0x68] sm:$0xff]
        %v212 = vld [vmem:[%s163 + $0x70] sm:$0xff]
        %v213 = vld [vmem:[%s163 + $0x78] sm:$0xff]
        %v214 = vld [vmem:[%s163 + $0x80] sm:$0xff]
        %v215 = vld [vmem:[%s163 + $0x88] sm:$0xff]
        %v216 = vld [vmem:[%s163 + $0x90] sm:$0xff]
        %v217 = vld [vmem:[%s163 + $0x98] sm:$0xff]
        %v218 = vld [vmem:[%s163 + $0xa0] sm:$0xff]
        %v219 = vld [vmem:[%s163 + $0xa8] sm:$0xff]
        %v220 = vld [vmem:[%s163 + $0xb0] sm:$0xff]
        %v221 = vld [vmem:[%s163 + $0xb8] sm:$0xff]
        %v222 = vld [vmem:[%s163 + $0xc0] sm:$0xff]
        %v223 = vld [vmem:[%s163 + $0xc8] sm:$0xff]
        %v224 = vld [vmem:[%s163 + $0xd0] sm:$0xff]
        %v225 = vld [vmem:[%s163 + $0xd8] sm:$0xff]
        %v226 = vld [vmem:[%s172] sm:$0xff]
        %v227 = vld [vmem:[%s172 + $0x8] sm:$0xff]
        %v228 = vld [vmem:[%s172 + $0x10] sm:$0xff]
        %v229 = vld [vmem:[%s172 + $0x18] sm:$0xff]
        %v230 = vld [vmem:[%s172 + $0x20] sm:$0xff]
        %v231 = vld [vmem:[%s172 + $0x28] sm:$0xff]
        %v232 = vld [vmem:[%s172 + $0x30] sm:$0xff]
        %v233 = vld [vmem:[%s172 + $0x38] sm:$0xff]
        %v234 = vld [vmem:[%s172 + $0x40] sm:$0xff]
        %v235 = vld [vmem:[%s172 + $0x48] sm:$0xff]
        %v236 = vld [vmem:[%s172 + $0x50] sm:$0xff]
        %v237 = vld [vmem:[%s172 + $0x58] sm:$0xff]
        %v238 = vld [vmem:[%s172 + $0x60] sm:$0xff]
        %v239 = vld [vmem:[%s172 + $0x68] sm:$0xff]
        %v240 = vld [vmem:[%s172 + $0x70] sm:$0xff]
        %v241 = vld [vmem:[%s172 + $0x78] sm:$0xff]
        %v242 = vld [vmem:[%s172 + $0x80] sm:$0xff]
        %v243 = vld [vmem:[%s172 + $0x88] sm:$0xff]
        %v244 = vld [vmem:[%s172 + $0x90] sm:$0xff]
        %v245 = vld [vmem:[%s172 + $0x98] sm:$0xff]
        %v246 = vld [vmem:[%s172 + $0xa0] sm:$0xff]
        %v247 = vld [vmem:[%s172 + $0xa8] sm:$0xff]
        %v248 = vld [vmem:[%s172 + $0xb0] sm:$0xff]
        %v249 = vld [vmem:[%s172 + $0xb8] sm:$0xff]
        %v250 = vld [vmem:[%s172 + $0xc0] sm:$0xff]
        %v251 = vld [vmem:[%s172 + $0xc8] sm:$0xff]
        %v252 = vld [vmem:[%s172 + $0xd0] sm:$0xff]
        %v253 = vld [vmem:[%s172 + $0xd8] sm:$0xff]
        %v254 = vadd.f32 %v198, %v226
        %v255 = vadd.f32 %v199, %v227
        %v256 = vadd.f32 %v200, %v228
        %v257 = vadd.f32 %v201, %v229
        %v258 = vadd.f32 %v202, %v230
        %v259 = vadd.f32 %v203, %v231
        %v260 = vadd.f32 %v204, %v232
        %v261 = vadd.f32 %v205, %v233
        %v262 = vadd.f32 %v206, %v234
        %v263 = vadd.f32 %v207, %v235
        %v264 = vadd.f32 %v208, %v236
        %v265 = vadd.f32 %v209, %v237
        %v266 = vadd.f32 %v210, %v238
        %v267 = vadd.f32 %v211, %v239
        %v268 = vadd.f32 %v212, %v240
        %v269 = vadd.f32 %v213, %v241
        %v270 = vadd.f32 %v214, %v242
        %v271 = vadd.f32 %v215, %v243
        %v272 = vadd.f32 %v216, %v244
        %v273 = vadd.f32 %v217, %v245
        %v274 = vadd.f32 %v218, %v246
        %v275 = vadd.f32 %v219, %v247
        %v276 = vadd.f32 %v220, %v248
        %v277 = vadd.f32 %v221, %v249
        %v278 = vadd.f32 %v222, %v250
        %v279 = vadd.f32 %v223, %v251
        %v280 = vadd.f32 %v224, %v252
        %v281 = vadd.f32 %v225, %v253
        %v282 = vmax.f32 %v254, 0.0
        %v283 = vmax.f32 %v255, 0.0
        %v284 = vmax.f32 %v256, 0.0
        %v285 = vmax.f32 %v257, 0.0
        %v286 = vmax.f32 %v258, 0.0
        %v287 = vmax.f32 %v259, 0.0
        %v288 = vmax.f32 %v260, 0.0
        %v289 = vmax.f32 %v261, 0.0
        %v290 = vmax.f32 %v262, 0.0
        %v291 = vmax.f32 %v263, 0.0
        %v292 = vmax.f32 %v264, 0.0
        %v293 = vmax.f32 %v265, 0.0
        %v294 = vmax.f32 %v266, 0.0
        %v295 = vmax.f32 %v267, 0.0
        %v296 = vmax.f32 %v268, 0.0
        %v297 = vmax.f32 %v269, 0.0
        %v298 = vmax.f32 %v270, 0.0
        %v299 = vmax.f32 %v271, 0.0
        %v300 = vmax.f32 %v272, 0.0
        %v301 = vmax.f32 %v273, 0.0
        %v302 = vmax.f32 %v274, 0.0
        %v303 = vmax.f32 %v275, 0.0
        %v304 = vmax.f32 %v276, 0.0
        %v305 = vmax.f32 %v277, 0.0
        %v306 = vmax.f32 %v278, 0.0
        %v307 = vmax.f32 %v279, 0.0
        %v308 = vmax.f32 %v280, 0.0
        %v309 = vmax.f32 %v281, 0.0
        %310 = vst [vmem:[%s197] sm:$0xff] %v282
        %311 = vst [vmem:[%s197 + $0x8] sm:$0xff] %v283
        %312 = vst [vmem:[%s197 + $0x10] sm:$0xff] %v284
        %313 = vst [vmem:[%s197 + $0x18] sm:$0xff] %v285
        %314 = vst [vmem:[%s197 + $0x20] sm:$0xff] %v286
        %315 = vst [vmem:[%s197 + $0x28] sm:$0xff] %v287
        %316 = vst [vmem:[%s197 + $0x30] sm:$0xff] %v288
        %317 = vst [vmem:[%s197 + $0x38] sm:$0xff] %v289
        %318 = vst [vmem:[%s197 + $0x40] sm:$0xff] %v290
        %319 = vst [vmem:[%s197 + $0x48] sm:$0xff] %v291
        %320 = vst [vmem:[%s197 + $0x50] sm:$0xff] %v292
        %321 = vst [vmem:[%s197 + $0x58] sm:$0xff] %v293
        %322 = vst [vmem:[%s197 + $0x60] sm:$0xff] %v294
        %323 = vst [vmem:[%s197 + $0x68] sm:$0xff] %v295
        %324 = vst [vmem:[%s197 + $0x70] sm:$0xff] %v296
        %325 = vst [vmem:[%s197 + $0x78] sm:$0xff] %v297
        %326 = vst [vmem:[%s197 + $0x80] sm:$0xff] %v298
        %327 = vst [vmem:[%s197 + $0x88] sm:$0xff] %v299
        %328 = vst [vmem:[%s197 + $0x90] sm:$0xff] %v300
        %329 = vst [vmem:[%s197 + $0x98] sm:$0xff] %v301
        %330 = vst [vmem:[%s197 + $0xa0] sm:$0xff] %v302
        %331 = vst [vmem:[%s197 + $0xa8] sm:$0xff] %v303
        %332 = vst [vmem:[%s197 + $0xb0] sm:$0xff] %v304
        %333 = vst [vmem:[%s197 + $0xb8] sm:$0xff] %v305
        %334 = vst [vmem:[%s197 + $0xc0] sm:$0xff] %v306
        %335 = vst [vmem:[%s197 + $0xc8] sm:$0xff] %v307
        %336 = vst [vmem:[%s197 + $0xd0] sm:$0xff] %v308
        %337 = vst [vmem:[%s197 + $0xd8] sm:$0xff] %v309
        %s338 = sand.u32 %s82, 1
        %s339 = scalar_lea.sflag [#allocation4], %s338
        %s340 = sand.u32 %s82, 1
        %s341 = smul.addr %s340, 224
        %s342 = scalar_lea.vmem [#allocation7], %s341
        // Predicated region
        $region37: #{tpu_custom_call.1} parent=27 // pred_check
          %p343 = pneg %p92
        $region38: #{tpu_custom_call.1} parent=27 // pred_check_branch
          %345 = sbr.rel (%p343) target = $region40
        $region39: #{tpu_custom_call.1} parent=27 // pred_region
          %s347 = ssub.s32 3584, 3584
          %348 = vsyncadd %s339, %s347
          %s349 = smul.addr %s22, 28
          %s350 = smul.addr %s349, 128
          %s351 = scalar_lea.hbm %s2, %s350
          %s353 = sshll.u32 %s342, 4
          %s354 = int_to_ptr.vmem [resolvable:$true] %s353
          %356 = dma.vmem_to_hbm [thread:$0]  %s354, 3584, %s351, %s339
        $region40: #{tpu_custom_call.1} parent=27 // pred_fallthru
          _
      $region28: #{tpu_custom_call.1} parent=5 // pred_fallthru
        _
      %p357 = scmp.le.s32.totalorder 2, %s17
      // Predicated region
      $region41: #{tpu_custom_call.1} parent=5 // pred_check
        %p358 = pneg %p357
      $region42: #{tpu_custom_call.1} parent=5 // pred_check_branch
        %360 = sbr.rel (%p358) target = $region44
      $region43: #{tpu_custom_call.1} parent=5 // pred_region
        %s361 = ssub.s32 %s17, 2
        // Predicated region
        $region45: #{tpu_custom_call.1} parent=43 // pred_check
          %p362 = pneg %p98
        $region46: #{tpu_custom_call.1} parent=43 // pred_check_branch
          %364 = sbr.rel (%p362) target = $region48
        $region47: #{tpu_custom_call.1} parent=43 // pred_region
          %s365 = sand.u32 %s83, 1
          %s366 = scalar_lea.sflag [#allocation4], %s365
          %s367 = sand.u32 %s83, 1
          %s368 = smul.addr %s367, 224
          %s369 = scalar_lea.vmem [#allocation7], %s368
          %370 = dma.done %s366, 3584
        $region48: #{tpu_custom_call.1} parent=43 // pred_fallthru
          _
      $region44: #{tpu_custom_call.1} parent=5 // pred_fallthru
        _
    $region6: #{tpu_custom_call.1} parent=1 // loop_footer
      %s21 = sadd.s32 1, %s17
    $region7: #{tpu_custom_call.1} parent=1 // loop_footer_branch
      %16 = sbr.rel target = $region3
    $region8: #{tpu_custom_call.1} parent=1 // loop_exit
      _
    %371 = vsyncpa [#allocation3], 1
    %s372 = scalar_lea.sflag [#allocation3], 1
    %373 = vsyncpa %s372, 1
    %374 = vsyncpa [#allocation6], 1
    %s375 = scalar_lea.sflag [#allocation6], 1
    %376 = vsyncpa %s375, 1
    %377 = vsyncpa [#allocation4], 1
    %s378 = scalar_lea.sflag [#allocation4], 1
    %379 = vsyncpa %s378, 1

</llo_original>
